<compile_context>
chip_gen: v5e
topology: v5e:2x2
jax: 0.10.0
libtpu: 0.0.40
codegen_flags: <defaults>
</compile_context>

<pallas_src>
import numpy as np
import jax
import jax.numpy as jnp
from jax import lax
from jax.experimental import pallas as pl
from jax.experimental.pallas import tpu as pltpu

# ----------------------------- configuration --------------------------------
B = 2
C = 32          # in_channels
KC = 16         # key_channels
CO = 32         # out_channels
H, W = 16, 16   # feats spatial
HW = H * W      # 256 -> lane-dense
NP = 8          # proxy regions (proxy spatial = 8 x 1)
EPS = 1e-5
PREC_HI = lax.Precision.HIGHEST   # reference only


# ----------------------------- parameter init -------------------------------
def init_params(key):
    ks = jax.random.split(key, 14)

    def conv_w(k, o, i):
        return jax.random.normal(k, (o, i), jnp.float32) * (1.0 / np.sqrt(i))

    def bn(k, c):
        k1, k2, k3, k4 = jax.random.split(k, 4)
        gamma = 1.0 + 0.1 * jax.random.normal(k1, (c,), jnp.float32)
        beta = 0.1 * jax.random.normal(k2, (c,), jnp.float32)
        mean = 0.1 * jax.random.normal(k3, (c,), jnp.float32)
        var = jnp.abs(jax.random.normal(k4, (c,), jnp.float32)) + 0.5
        scale = gamma / jnp.sqrt(var + EPS)
        bias = beta - mean * scale
        return scale, bias

    P = {}
    P['wp1'] = conv_w(ks[0], KC, C);     P['sp1'], P['bp1'] = bn(ks[1], KC)    # f_pixel[0]
    P['wp2'] = conv_w(ks[2], KC, KC);    P['sp2'], P['bp2'] = bn(ks[3], KC)    # f_pixel[1]
    P['wo1'] = conv_w(ks[4], KC, C);     P['so1'], P['bo1'] = bn(ks[5], KC)    # f_object[0]
    P['wo2'] = conv_w(ks[6], KC, KC);    P['so2'], P['bo2'] = bn(ks[7], KC)    # f_object[1]
    P['wd'] = conv_w(ks[8], KC, C);      P['sd'], P['bd'] = bn(ks[9], KC)      # f_down
    P['wu'] = conv_w(ks[10], C, KC);     P['su'], P['bu'] = bn(ks[11], C)      # f_up
    P['wf'] = conv_w(ks[12], CO, 2 * C); P['sf'], P['bfin'] = bn(ks[13], CO)   # final conv
    return P


def prep_kernel_params(P):
    """Fold BN into conv weights, fold attention scale, pack into one weight slab + one bias slab.

    Weight slab (144, 64) bf16 row layout (all boundaries multiples of 16 = bf16 sublane tile):
        [  0: 32, 0:64] wf    final conv on concat [ctx; feats]
        [ 32: 64, 0:32] wod   stacked [f_object[0]; f_down]  (shared proxy matmul)
        [ 64: 96, 0:16] wu    f_up
        [ 96:112, 0:32] wp1   f_pixel[0]
        [112:128, 0:16] wp2   f_pixel[1]
        [128:144, 0:16] wo2   f_object[1]  (KC^-0.5 folded in)
    Bias slab (144, 1) f32:
        [0:16] bp1, [16:32] bp2, [32:64] bod, [64:80] bo2(scaled), [80:112] bu, [112:144] bf
    """
    fold = lambda w, s: s[:, None] * w
    att_scale = KC ** -0.5

    wp1 = fold(P['wp1'], P['sp1'])                 # (16, 32)
    wp2 = fold(P['wp2'], P['sp2'])                 # (16, 16)
    wo1 = fold(P['wo1'], P['so1'])                 # (16, 32)
    wo2 = fold(P['wo2'], P['so2']) * att_scale     # (16, 16)  attention scale folded (ReLU pos-homog.)
    wd = fold(P['wd'], P['sd'])                    # (16, 32)
    wu = fold(P['wu'], P['su'])                    # (32, 16)
    wf = fold(P['wf'], P['sf'])                    # (32, 64)
    wod = jnp.concatenate([wo1, wd], axis=0)       # (32, 32)

    pad64 = lambda w: jnp.pad(w, ((0, 0), (0, 64 - w.shape[1])))
    w_slab = jnp.concatenate(
        [pad64(wf), pad64(wod), pad64(wu), pad64(wp1), pad64(wp2), pad64(wo2)],
        axis=0).astype(jnp.bfloat16)               # (144, 64)

    bod = jnp.concatenate([P['bo1'], P['bd']])     # (32,)
    bo2 = P['bo2'] * att_scale                     # (16,)
    b_slab = jnp.concatenate(
        [P['bp1'], P['bp2'], bod, bo2, P['bu'], P['bfin']]
    ).reshape(-1, 1).astype(jnp.float32)           # (144, 1)
    return w_slab, b_slab


# ------------------------------ Pallas kernel --------------------------------
def ocr_kernel(x_ref, p_ref, w_ref, b_ref, o_ref):
    BF = jnp.bfloat16
    mm = lambda a, b: jnp.dot(a, b, preferred_element_type=jnp.float32)

    xb = x_ref[0]                                  # (C=32, HW=256) bf16, channels=sublane
    pcs = p_ref[0]                                 # (C=32, Np=8)  bf16

    # static slices of the packed slabs (no extra DMAs)
    wf = w_ref[0:32, 0:64]
    wod = w_ref[32:64, 0:32]
    wu = w_ref[64:96, 0:16]
    wp1 = w_ref[96:112, 0:32]
    wp2 = w_ref[112:128, 0:16]
    wo2 = w_ref[128:144, 0:16]

    bp1 = b_ref[0:16]                              # (16, 1) column biases (broadcast over lanes)
    bp2 = b_ref[16:32]
    bod = b_ref[32:64]
    bo2 = b_ref[64:80]
    bu = b_ref[80:112]
    bfin = b_ref[112:144]

    # f_pixel(feats) -> query^T (Kc, HW)
    q = jnp.maximum(mm(wp1, xb) + bp1, 0.0)
    q = jnp.maximum(mm(wp2, q.astype(BF)) + bp2, 0.0)

    # proxy path: single matmul for f_object[0] + f_down (stacked weight), column layout (., Np)
    kv = jnp.maximum(mm(wod, pcs) + bod, 0.0)      # (32, 8) f32
    k_pre = kv[0:16].astype(BF)                    # (Kc, Np) key first layer
    v = kv[16:32].astype(BF)                       # (Kc, Np) value

    # f_object[1]: key (Kc, Np), with KC^-0.5 already folded into wo2/bo2
    k = jnp.maximum(mm(wo2, k_pre) + bo2, 0.0)     # (16, 8) f32
    kT = jnp.transpose(k).astype(BF)               # (8, 16) tiny XLU transpose

    # attention logits sim^T = (scaled key)^T @ query^T -> (Np, HW); softmax over Np (sublanes)
    simT = mm(kT, q.astype(BF))                    # (8, 256) f32
    simT = simT - jnp.max(simT, axis=0, keepdims=True)
    e = jnp.exp(simT)
    probs = (e * pl.reciprocal(jnp.sum(e, axis=0, keepdims=True), approx=True)).astype(BF)

    # context^T = value^T @ probs -> (Kc, HW); then f_up: Kc -> C
    ctx = mm(v, probs)                             # (16, 256) f32
    ctx = jnp.maximum(mm(wu, ctx.astype(BF)) + bu, 0.0)   # (32, 256)

    # final ConvBNReLU on concat([context, feats]) -> single fused matmul on (64, 256) operand
    # TODO(synk): Dropout2d(p=0.1) omitted - identity in eval/inference mode.
    cat = jnp.concatenate([ctx.astype(BF), xb], axis=0)   # (64, 256) bf16, sublane concat
    out = mm(wf, cat) + bfin                       # (32, 256) f32
    o_ref[0] = jnp.maximum(out, 0.0)               # lane-dense store (256 lanes)


# ------------------------------ wrapper ---------------------------------------
def spatial_ocr_forward(feats_nchw, proxy_nchw, P):
    # NCHW flattened to (B, C, H*W) is already the kernel layout -> no transposes.
    # bf16 cast in the wrapper halves the activation DMAs (MXU operands are bf16 anyway).
    x = feats_nchw.reshape(B, C, HW).astype(jnp.bfloat16)
    p = proxy_nchw.reshape(B, C, NP).astype(jnp.bfloat16)
    w_slab, b_slab = prep_kernel_params(P)

    const2d = lambda shape: pl.BlockSpec(shape, lambda b: (0, 0))  # DMA'd once, not per grid step

    out_flat = pl.pallas_call(
        ocr_kernel,
        out_shape=jax.ShapeDtypeStruct((B, CO, HW), jnp.float32),
        grid=(B,),
        in_specs=[
            pl.BlockSpec((1, C, HW), lambda b: (b, 0, 0)),   # feats (bf16)
            pl.BlockSpec((1, C, NP), lambda b: (b, 0, 0)),   # proxy (bf16, channel-major)
            const2d((144, 64)),                              # packed bf16 weight slab
            const2d((144, 1)),                               # packed f32 bias slab
        ],
        out_specs=pl.BlockSpec((1, CO, HW), lambda b: (b, 0, 0)),
        compiler_params=pltpu.CompilerParams(dimension_semantics=("parallel",)),
    )(x, p, w_slab, b_slab)
    return out_flat.reshape(B, CO, H, W)


# ------------------------------ plain-JAX reference ---------------------------
def cbr_ref(x_nchw, w_oi, scale, bias):
    y = jnp.einsum('bihw,oi->bohw', x_nchw, w_oi, precision=PREC_HI)
    return jax.nn.relu(y * scale.reshape(1, -1, 1, 1) + bias.reshape(1, -1, 1, 1))


def reference(feats, proxy, P):
    Bn, _, Hn, Wn = feats.shape
    q = cbr_ref(cbr_ref(feats, P['wp1'], P['sp1'], P['bp1']), P['wp2'], P['sp2'], P['bp2'])
    k = cbr_ref(cbr_ref(proxy, P['wo1'], P['so1'], P['bo1']), P['wo2'], P['so2'], P['bo2'])
    v = cbr_ref(proxy, P['wd'], P['sd'], P['bd'])
    query = q.reshape(Bn, KC, Hn * Wn).transpose(0, 2, 1)          # (B, HW, Kc)
    key = k.reshape(Bn, KC, -1)                                    # (B, Kc, Np)
    value = v.reshape(Bn, KC, -1).transpose(0, 2, 1)               # (B, Np, Kc)
    sim = jnp.einsum('bqc,bcn->bqn', query, key, precision=PREC_HI) * (KC ** -0.5)
    sim = jax.nn.softmax(sim, axis=-1)
    ctx = jnp.einsum('bqn,bnc->bqc', sim, value, precision=PREC_HI)
    ctx = ctx.transpose(0, 2, 1).reshape(Bn, KC, Hn, Wn)
    ctx = cbr_ref(ctx, P['wu'], P['su'], P['bu'])                  # (B, C, H, W)
    cat = jnp.concatenate([ctx, feats], axis=1)
    out = cbr_ref(cat, P['wf'], P['sf'], P['bfin'])                # (B, Co, H, W)
    return out                                                     # dropout: identity (eval)


# ------------------------------------ main -----------------------------------
if __name__ == "__main__":
    key = jax.random.PRNGKey(0)
    kf, kp, kw = jax.random.split(key, 3)
    feats = jax.random.normal(kf, (B, C, H, W), jnp.float32)       # (2, 32, 16, 16)
    proxy = jax.random.normal(kp, (B, C, NP, 1), jnp.float32)      # (2, 32, 8, 1)
    P = init_params(kw)

    out = spatial_ocr_forward(feats, proxy, P)
    out = jax.block_until_ready(out)

    ref = reference(feats, proxy, P)
    # bf16 MXU operands / bf16 activation DMAs -> relaxed tolerance vs f32-HIGHEST reference
    np.testing.assert_allclose(np.asarray(out), np.asarray(ref), rtol=5e-2, atol=5e-2)
    assert out.shape == (B, CO, H, W)
    print("KERNEL_OK")
</pallas_src>

<mosaic_0001>
module attributes {stable_mosaic.version = 11 : i64} {
  func.func @ocr_kernel(%arg0: i32, %arg1: memref<1x32x256xbf16, #tpu.memory_space<vmem>>, %arg2: memref<1x32x8xbf16, #tpu.memory_space<vmem>>, %arg3: memref<144x64xbf16, #tpu.memory_space<vmem>>, %arg4: memref<144x1xf32, #tpu.memory_space<vmem>>, %arg5: memref<1x32x256xf32, #tpu.memory_space<vmem>>) attributes {dimension_semantics = [#tpu.dimension_semantics<parallel>], iteration_bounds = array<i64: 2>, scalar_prefetch = 0 : i64, scratch_operands = 0 : i64, tpu.core_type = #tpu.core_type<tc>, window_params = [{transform_indices = @transform_0, window_bounds = array<i64: 1, 32, 256>}, {transform_indices = @transform_1, window_bounds = array<i64: 1, 32, 8>}, {pipeline_mode = #tpu.pipeline_mode<synchronous>, transform_indices = @transform_2, window_bounds = array<i64: 144, 64>}, {pipeline_mode = #tpu.pipeline_mode<synchronous>, transform_indices = @transform_3, window_bounds = array<i64: 144, 1>}, {transform_indices = @transform_4, window_bounds = array<i64: 1, 32, 256>}]} {
    %c0 = arith.constant 0 : index
    %c0_0 = arith.constant 0 : index
    %c0_1 = arith.constant 0 : index
    %0 = vector.load %arg1[%c0, %c0_0, %c0_1] : memref<1x32x256xbf16, #tpu.memory_space<vmem>>, vector<1x32x256xbf16>
    %1 = vector.shape_cast %0 : vector<1x32x256xbf16> to vector<32x256xbf16>
    %c0_2 = arith.constant 0 : index
    %c0_3 = arith.constant 0 : index
    %c0_4 = arith.constant 0 : index
    %2 = vector.load %arg2[%c0_2, %c0_3, %c0_4] : memref<1x32x8xbf16, #tpu.memory_space<vmem>>, vector<1x32x8xbf16>
    %3 = vector.shape_cast %2 : vector<1x32x8xbf16> to vector<32x8xbf16>
    %c0_5 = arith.constant 0 : index
    %c0_6 = arith.constant 0 : index
    %4 = vector.load %arg3[%c0_5, %c0_6] : memref<144x64xbf16, #tpu.memory_space<vmem>>, vector<32x64xbf16>
    %c32 = arith.constant 32 : index
    %c0_7 = arith.constant 0 : index
    %5 = vector.load %arg3[%c32, %c0_7] : memref<144x64xbf16, #tpu.memory_space<vmem>>, vector<32x32xbf16>
    %c64 = arith.constant 64 : index
    %c0_8 = arith.constant 0 : index
    %6 = vector.load %arg3[%c64, %c0_8] : memref<144x64xbf16, #tpu.memory_space<vmem>>, vector<32x16xbf16>
    %c96 = arith.constant 96 : index
    %c0_9 = arith.constant 0 : index
    %7 = vector.load %arg3[%c96, %c0_9] : memref<144x64xbf16, #tpu.memory_space<vmem>>, vector<16x32xbf16>
    %c112 = arith.constant 112 : index
    %c0_10 = arith.constant 0 : index
    %8 = vector.load %arg3[%c112, %c0_10] : memref<144x64xbf16, #tpu.memory_space<vmem>>, vector<16x16xbf16>
    %c128 = arith.constant 128 : index
    %c0_11 = arith.constant 0 : index
    %9 = vector.load %arg3[%c128, %c0_11] : memref<144x64xbf16, #tpu.memory_space<vmem>>, vector<16x16xbf16>
    %c0_12 = arith.constant 0 : index
    %c0_13 = arith.constant 0 : index
    %10 = vector.load %arg4[%c0_12, %c0_13] : memref<144x1xf32, #tpu.memory_space<vmem>>, vector<16x1xf32>
    %c16 = arith.constant 16 : index
    %c0_14 = arith.constant 0 : index
    %11 = vector.load %arg4[%c16, %c0_14] : memref<144x1xf32, #tpu.memory_space<vmem>>, vector<16x1xf32>
    %c32_15 = arith.constant 32 : index
    %c0_16 = arith.constant 0 : index
    %12 = vector.load %arg4[%c32_15, %c0_16] : memref<144x1xf32, #tpu.memory_space<vmem>>, vector<32x1xf32>
    %c64_17 = arith.constant 64 : index
    %c0_18 = arith.constant 0 : index
    %13 = vector.load %arg4[%c64_17, %c0_18] : memref<144x1xf32, #tpu.memory_space<vmem>>, vector<16x1xf32>
    %c80 = arith.constant 80 : index
    %c0_19 = arith.constant 0 : index
    %14 = vector.load %arg4[%c80, %c0_19] : memref<144x1xf32, #tpu.memory_space<vmem>>, vector<32x1xf32>
    %c112_20 = arith.constant 112 : index
    %c0_21 = arith.constant 0 : index
    %15 = vector.load %arg4[%c112_20, %c0_21] : memref<144x1xf32, #tpu.memory_space<vmem>>, vector<32x1xf32>
    %cst = arith.constant dense<0.000000e+00> : vector<16x256xf32>
    %16 = tpu.matmul %7, %1, %cst {dimension_numbers = #tpu.dot_dimension_numbers<[1], [0], [0], [1], [0, 0, 1, 1], [], []>} : vector<16x32xbf16>, vector<32x256xbf16>, vector<16x256xf32> -> vector<16x256xf32>
    %17 = vector.broadcast %10 : vector<16x1xf32> to vector<16x256xf32>
    %18 = arith.addf %16, %17 : vector<16x256xf32>
    %cst_22 = arith.constant 0.000000e+00 : f32
    %19 = vector.broadcast %cst_22 : f32 to vector<16x256xf32>
    %20 = arith.maximumf %18, %19 : vector<16x256xf32>
    %21 = arith.truncf %20 : vector<16x256xf32> to vector<16x256xbf16>
    %cst_23 = arith.constant dense<0.000000e+00> : vector<16x256xf32>
    %22 = tpu.matmul %8, %21, %cst_23 {dimension_numbers = #tpu.dot_dimension_numbers<[1], [0], [0], [1], [0, 0, 1, 1], [], []>} : vector<16x16xbf16>, vector<16x256xbf16>, vector<16x256xf32> -> vector<16x256xf32>
    %23 = vector.broadcast %11 : vector<16x1xf32> to vector<16x256xf32>
    %24 = arith.addf %22, %23 : vector<16x256xf32>
    %cst_24 = arith.constant 0.000000e+00 : f32
    %25 = vector.broadcast %cst_24 : f32 to vector<16x256xf32>
    %26 = arith.maximumf %24, %25 : vector<16x256xf32>
    %cst_25 = arith.constant dense<0.000000e+00> : vector<32x8xf32>
    %27 = tpu.matmul %5, %3, %cst_25 {dimension_numbers = #tpu.dot_dimension_numbers<[1], [0], [0], [1], [0, 0, 1, 1], [], []>} : vector<32x32xbf16>, vector<32x8xbf16>, vector<32x8xf32> -> vector<32x8xf32>
    %28 = vector.broadcast %12 : vector<32x1xf32> to vector<32x8xf32>
    %29 = arith.addf %27, %28 : vector<32x8xf32>
    %cst_26 = arith.constant 0.000000e+00 : f32
    %30 = vector.broadcast %cst_26 : f32 to vector<32x8xf32>
    %31 = arith.maximumf %29, %30 : vector<32x8xf32>
    %32 = vector.extract_strided_slice %31 {offsets = [0, 0], sizes = [16, 8], strides = [1, 1]} : vector<32x8xf32> to vector<16x8xf32>
    %33 = arith.truncf %32 : vector<16x8xf32> to vector<16x8xbf16>
    %34 = vector.extract_strided_slice %31 {offsets = [16, 0], sizes = [16, 8], strides = [1, 1]} : vector<32x8xf32> to vector<16x8xf32>
    %35 = arith.truncf %34 : vector<16x8xf32> to vector<16x8xbf16>
    %cst_27 = arith.constant dense<0.000000e+00> : vector<16x8xf32>
    %36 = tpu.matmul %9, %33, %cst_27 {dimension_numbers = #tpu.dot_dimension_numbers<[1], [0], [0], [1], [0, 0, 1, 1], [], []>} : vector<16x16xbf16>, vector<16x8xbf16>, vector<16x8xf32> -> vector<16x8xf32>
    %37 = vector.broadcast %13 : vector<16x1xf32> to vector<16x8xf32>
    %38 = arith.addf %36, %37 : vector<16x8xf32>
    %cst_28 = arith.constant 0.000000e+00 : f32
    %39 = vector.broadcast %cst_28 : f32 to vector<16x8xf32>
    %40 = arith.maximumf %38, %39 : vector<16x8xf32>
    %41 = tpu.transpose %40, [1, 0] : vector<16x8xf32> -> vector<8x16xf32>
    %42 = arith.truncf %41 : vector<8x16xf32> to vector<8x16xbf16>
    %43 = arith.truncf %26 : vector<16x256xf32> to vector<16x256xbf16>
    %cst_29 = arith.constant dense<0.000000e+00> : vector<8x256xf32>
    %44 = tpu.matmul %42, %43, %cst_29 {dimension_numbers = #tpu.dot_dimension_numbers<[1], [0], [0], [1], [0, 0, 1, 1], [], []>} : vector<8x16xbf16>, vector<16x256xbf16>, vector<8x256xf32> -> vector<8x256xf32>
    %cst_30 = arith.constant dense<0xFF800000> : vector<256xf32>
    %45 = vector.multi_reduction <maximumf>, %44, %cst_30 [0] : vector<8x256xf32> to vector<256xf32>
    %46 = vector.shape_cast %45 : vector<256xf32> to vector<1x256xf32>
    %47 = vector.broadcast %46 : vector<1x256xf32> to vector<8x256xf32>
    %48 = arith.subf %44, %47 : vector<8x256xf32>
    %49 = math.exp %48 : vector<8x256xf32>
    %cst_31 = arith.constant dense<0.000000e+00> : vector<256xf32>
    %50 = vector.multi_reduction <add>, %49, %cst_31 [0] : vector<8x256xf32> to vector<256xf32>
    %51 = vector.shape_cast %50 : vector<256xf32> to vector<1x256xf32>
    %52 = tpu.reciprocal %51 {approx = true} : vector<1x256xf32> -> vector<1x256xf32>
    %53 = vector.broadcast %52 : vector<1x256xf32> to vector<8x256xf32>
    %54 = arith.mulf %49, %53 : vector<8x256xf32>
    %55 = arith.truncf %54 : vector<8x256xf32> to vector<8x256xbf16>
    %cst_32 = arith.constant dense<0.000000e+00> : vector<16x256xf32>
    %56 = tpu.matmul %35, %55, %cst_32 {dimension_numbers = #tpu.dot_dimension_numbers<[1], [0], [0], [1], [0, 0, 1, 1], [], []>} : vector<16x8xbf16>, vector<8x256xbf16>, vector<16x256xf32> -> vector<16x256xf32>
    %57 = arith.truncf %56 : vector<16x256xf32> to vector<16x256xbf16>
    %cst_33 = arith.constant dense<0.000000e+00> : vector<32x256xf32>
    %58 = tpu.matmul %6, %57, %cst_33 {dimension_numbers = #tpu.dot_dimension_numbers<[1], [0], [0], [1], [0, 0, 1, 1], [], []>} : vector<32x16xbf16>, vector<16x256xbf16>, vector<32x256xf32> -> vector<32x256xf32>
    %59 = vector.broadcast %14 : vector<32x1xf32> to vector<32x256xf32>
    %60 = arith.addf %58, %59 : vector<32x256xf32>
    %cst_34 = arith.constant 0.000000e+00 : f32
    %61 = vector.broadcast %cst_34 : f32 to vector<32x256xf32>
    %62 = arith.maximumf %60, %61 : vector<32x256xf32>
    %63 = arith.truncf %62 : vector<32x256xf32> to vector<32x256xbf16>
    %64 = tpu.concatenate %63, %1 in 0 : vector<32x256xbf16>, vector<32x256xbf16> -> vector<64x256xbf16>
    %cst_35 = arith.constant dense<0.000000e+00> : vector<32x256xf32>
    %65 = tpu.matmul %4, %64, %cst_35 {dimension_numbers = #tpu.dot_dimension_numbers<[1], [0], [0], [1], [0, 0, 1, 1], [], []>} : vector<32x64xbf16>, vector<64x256xbf16>, vector<32x256xf32> -> vector<32x256xf32>
    %66 = vector.broadcast %15 : vector<32x1xf32> to vector<32x256xf32>
    %67 = arith.addf %65, %66 : vector<32x256xf32>
    %cst_36 = arith.constant 0.000000e+00 : f32
    %68 = vector.broadcast %cst_36 : f32 to vector<32x256xf32>
    %69 = arith.maximumf %67, %68 : vector<32x256xf32>
    %c0_37 = arith.constant 0 : index
    %c0_38 = arith.constant 0 : index
    %c0_39 = arith.constant 0 : index
    %70 = vector.load %arg5[%c0_37, %c0_38, %c0_39] : memref<1x32x256xf32, #tpu.memory_space<vmem>>, vector<1x32x256xf32>
    %71 = vector.shape_cast %70 : vector<1x32x256xf32> to vector<32x256xf32>
    %72 = vector.shape_cast %69 : vector<32x256xf32> to vector<1x32x256xf32>
    tpu.vector_store %arg5[%c0_37, %c0_38, %c0_39], %72 {strides = array<i32>} : memref<1x32x256xf32, #tpu.memory_space<vmem>>, vector<1x32x256xf32>,
    return
  }
  func.func @transform_0(%arg0: i32) -> (i32, i32, i32) {
    %c0_i32 = arith.constant 0 : i32
    %c0_i32_0 = arith.constant 0 : i32
    %c0_i32_1 = arith.constant 0 : i32
    return %arg0, %c0_i32, %c0_i32_0 : i32, i32, i32
  }
  func.func @transform_1(%arg0: i32) -> (i32, i32, i32) {
    %c0_i32 = arith.constant 0 : i32
    %c0_i32_0 = arith.constant 0 : i32
    %c0_i32_1 = arith.constant 0 : i32
    return %arg0, %c0_i32, %c0_i32_0 : i32, i32, i32
  }
  func.func @transform_2(%arg0: i32) -> (i32, i32) {
    %c0_i32 = arith.constant 0 : i32
    %c0_i32_0 = arith.constant 0 : i32
    %c0_i32_1 = arith.constant 0 : i32
    return %c0_i32, %c0_i32_0 : i32, i32
  }
  func.func @transform_3(%arg0: i32) -> (i32, i32) {
    %c0_i32 = arith.constant 0 : i32
    %c0_i32_0 = arith.constant 0 : i32
    %c0_i32_1 = arith.constant 0 : i32
    return %c0_i32, %c0_i32_0 : i32, i32
  }
  func.func @transform_4(%arg0: i32) -> (i32, i32, i32) {
    %c0_i32 = arith.constant 0 : i32
    %c0_i32_0 = arith.constant 0 : i32
    %c0_i32_1 = arith.constant 0 : i32
    return %arg0, %c0_i32, %c0_i32_0 : i32, i32, i32
  }
}

</mosaic_0001>

<llo_original>
// kernel: tpu_custom_call.1
$region0: #{tpu_custom_call.1}
  #allocation0 [shape = 'u32[]', space=smem, size = 0x4, offset = 0x4, fixed_abs, tag = 'smem constant byte address 0x4 - core index']
  #allocation1 [shape = 'u32[72,128]{1,0:T(1,128)}', space=vmem, size = 0x9000, scoped, tag = 'internal scratch']
  %s0 = inlined_call_operand.vmem [shape: bf16[2,32,256], index: 0, kind: input, shape index: {}]
  %s1 = inlined_call_operand.vmem [shape: bf16[2,32,8], index: 1, kind: input, shape index: {}]
  %s2 = inlined_call_operand.vmem [shape: bf16[144,64], index: 2, kind: input, shape index: {}]
  %s3 = inlined_call_operand.vmem [shape: f32[144,1], index: 3, kind: input, shape index: {}]
  %s4 = inlined_call_operand.hbm [shape: f32[2,32,256], index: 4, kind: output, shape index: {}]
  %s5 = sld [smem:[#allocation0]]
  $region49: #{tpu_custom_call.1} parent=0
    _
  %s7 = ssub.s32 1, %s5
  %s8 = scalar_select 0, %s7, %s5
  $region1: #{tpu_custom_call.1} parent=0
    #allocation2 [shape = 'u8[65536]{0}', space=vmem, size = 0x10000, scoped, tag = 'output window, operand 0']
    #allocation3 [shape = 's32[2]{0}', space=sflag, size = 0x8, scoped, tag = 'scoped memory for tpu_custom_call.1']
    %9 = vsyncpa [#allocation3], 0
    %s10 = scalar_lea.sflag [#allocation3], 1
    %11 = vsyncpa %s10, 0
    loop: start=0, step=1, limit=4
    $region2: #{tpu_custom_call.1} parent=1 // loop_pre_header
      _
    $region3: #{tpu_custom_call.1} parent=1 // loop_header
      %s13 = sphi 0, %s17
      %p14 = scmp.ge.s32.totalorder %s13, 4
      %s23 = sphi 0, %s25
      %s26 = sphi 0, %s23
      %s27 = sphi 0, %s26
      %s43 = sphi 0, %s27
      %s49 = sphi 0, %s51
      %s52 = sphi 0, %s49
      %s53 = sphi 0, %s52
      %s69 = sphi 0, %s53
      %s73 = sphi 0, %s73
      %s75 = sphi 0, %s73
      %s76 = sphi 0, %s75
      %s90 = sphi 0, %s76
      %s94 = sphi 0, %s94
      %s96 = sphi 0, %s94
      %s97 = sphi 0, %s96
      %s111 = sphi 0, %s97
      %s117 = sphi 0, %s119
      %s120 = sphi 0, %s117
      %s121 = sphi 0, %s120
      %s137 = sphi 0, %s121
    $region4: #{tpu_custom_call.1} parent=1 // loop_header_branch
      %16 = sbr.rel (%p14) target = $region8
    $region5: #{tpu_custom_call.1} parent=1 // loop_body
      %s18 = ssub.s32 %s13, 1
      %s19 = ssub.s32 %s13, 2
      %s20 = sadd.s32 %s13, 1
      %s21 = ssub.s32 %s13, %s20
      %p22 = scmp.eq.s32.totalorder %s21, 0
      %s24 = sadd.s32 %s23, 1
      %s25 = scalar_select %p22, %s23, %s24
      %p28 = pneg %p22
      %p29 = scmp.eq.s32.totalorder %s13, 1
      %p30 = por %p28, %p29
      %p31 = scmp.ne.s32.totalorder %s23, %s26
      %p32 = scmp.eq.s32.totalorder %s13, 0
      %p33 = por %p31, %p32
      %p34 = scmp.ne.s32.totalorder %s23, %s26
      %p35 = scmp.eq.s32.totalorder %s18, 1
      %p36 = por %p34, %p35
      %p37 = scmp.ne.s32.totalorder %s26, %s27
      %p38 = scmp.eq.s32.totalorder %s18, 0
      %p39 = por %p37, %p38
      %p40 = scmp.ne.s32.totalorder %s26, %s27
      %p41 = scmp.eq.s32.totalorder %s19, 1
      %p42 = por %p40, %p41
      %p44 = scmp.ne.s32.totalorder %s27, %s43
      %p45 = scmp.eq.s32.totalorder %s19, 0
      %p46 = por %p44, %p45
      %s47 = ssub.s32 %s13, %s20
      %p48 = scmp.eq.s32.totalorder %s47, 0
      %s50 = sadd.s32 %s49, 1
      %s51 = scalar_select %p48, %s49, %s50
      %p54 = pneg %p48
      %p55 = scmp.eq.s32.totalorder %s13, 1
      %p56 = por %p54, %p55
      %p57 = scmp.ne.s32.totalorder %s49, %s52
      %p58 = scmp.eq.s32.totalorder %s13, 0
      %p59 = por %p57, %p58
      %p60 = scmp.ne.s32.totalorder %s49, %s52
      %p61 = scmp.eq.s32.totalorder %s18, 1
      %p62 = por %p60, %p61
      %p63 = scmp.ne.s32.totalorder %s52, %s53
      %p64 = scmp.eq.s32.totalorder %s18, 0
      %p65 = por %p63, %p64
      %p66 = scmp.ne.s32.totalorder %s52, %s53
      %p67 = scmp.eq.s32.totalorder %s19, 1
      %p68 = por %p66, %p67
      %p70 = scmp.ne.s32.totalorder %s53, %s69
      %p71 = scmp.eq.s32.totalorder %s19, 0
      %p72 = por %p70, %p71
      %s74 = sadd.s32 %s73, 1
      %p77 = scmp.eq.s32.totalorder %s13, 1
      %p78 = scmp.ne.s32.totalorder %s73, %s75
      %p79 = scmp.eq.s32.totalorder %s13, 0
      %p80 = por %p78, %p79
      %p81 = scmp.ne.s32.totalorder %s73, %s75
      %p82 = scmp.eq.s32.totalorder %s18, 1
      %p83 = por %p81, %p82
      %p84 = scmp.ne.s32.totalorder %s75, %s76
      %p85 = scmp.eq.s32.totalorder %s18, 0
      %p86 = por %p84, %p85
      %p87 = scmp.ne.s32.totalorder %s75, %s76
      %p88 = scmp.eq.s32.totalorder %s19, 1
      %p89 = por %p87, %p88
      %p91 = scmp.ne.s32.totalorder %s76, %s90
      %p92 = scmp.eq.s32.totalorder %s19, 0
      %p93 = por %p91, %p92
      %s95 = sadd.s32 %s94, 1
      %p98 = scmp.eq.s32.totalorder %s13, 1
      %p99 = scmp.ne.s32.totalorder %s94, %s96
      %p100 = scmp.eq.s32.totalorder %s13, 0
      %p101 = por %p99, %p100
      %p102 = scmp.ne.s32.totalorder %s94, %s96
      %p103 = scmp.eq.s32.totalorder %s18, 1
      %p104 = por %p102, %p103
      %p105 = scmp.ne.s32.totalorder %s96, %s97
      %p106 = scmp.eq.s32.totalorder %s18, 0
      %p107 = por %p105, %p106
      %p108 = scmp.ne.s32.totalorder %s96, %s97
      %p109 = scmp.eq.s32.totalorder %s19, 1
      %p110 = por %p108, %p109
      %p112 = scmp.ne.s32.totalorder %s97, %s111
      %p113 = scmp.eq.s32.totalorder %s19, 0
      %p114 = por %p112, %p113
      %s115 = ssub.s32 %s13, %s20
      %p116 = scmp.eq.s32.totalorder %s115, 0
      %s118 = sadd.s32 %s117, 1
      %s119 = scalar_select %p116, %s117, %s118
      %p122 = pneg %p116
      %p123 = scmp.eq.s32.totalorder %s13, 1
      %p124 = por %p122, %p123
      %p125 = scmp.ne.s32.totalorder %s117, %s120
      %p126 = scmp.eq.s32.totalorder %s13, 0
      %p127 = por %p125, %p126
      %p128 = scmp.ne.s32.totalorder %s117, %s120
      %p129 = scmp.eq.s32.totalorder %s18, 1
      %p130 = por %p128, %p129
      %p131 = scmp.ne.s32.totalorder %s120, %s121
      %p132 = scmp.eq.s32.totalorder %s18, 0
      %p133 = por %p131, %p132
      %p134 = scmp.ne.s32.totalorder %s120, %s121
      %p135 = scmp.eq.s32.totalorder %s19, 1
      %p136 = por %p134, %p135
      %p138 = scmp.ne.s32.totalorder %s121, %s137
      %p139 = scmp.eq.s32.totalorder %s19, 0
      %p140 = por %p138, %p139
      %p141 = scmp.le.s32.totalorder 1, %s13
      %p142 = scmp.lt.s32.totalorder %s13, 3
      %p143 = pnand %p141, %p142
      %p144 = pneg %p143
      // Predicated region
      $region9: #{tpu_custom_call.1} parent=5 // pred_check
        _
      $region10: #{tpu_custom_call.1} parent=5 // pred_check_branch
        %146 = sbr.rel (%p143) target = $region12
      $region11: #{tpu_custom_call.1} parent=5 // pred_region
        %s147 = ssub.s32 %s13, 1
        // Predicated region
        $region13: #{tpu_custom_call.1} parent=11 // pred_check
          %p148 = pneg %p86
        $region14: #{tpu_custom_call.1} parent=11 // pred_check_branch
          %150 = sbr.rel (%p148) target = $region16
        $region15: #{tpu_custom_call.1} parent=11 // pred_region
          _
        $region16: #{tpu_custom_call.1} parent=11 // pred_fallthru
          _
        // Predicated region
        $region17: #{tpu_custom_call.1} parent=11 // pred_check
          %p151 = pneg %p107
        $region18: #{tpu_custom_call.1} parent=11 // pred_check_branch
          %153 = sbr.rel (%p151) target = $region20
        $region19: #{tpu_custom_call.1} parent=11 // pred_region
          _
        $region20: #{tpu_custom_call.1} parent=11 // pred_fallthru
          _
      $region12: #{tpu_custom_call.1} parent=5 // pred_fallthru
        _
      %p154 = scmp.lt.s32.totalorder %s13, 2
      // Predicated region
      $region21: #{tpu_custom_call.1} parent=5 // pred_check
        %p155 = pneg %p154
      $region22: #{tpu_custom_call.1} parent=5 // pred_check_branch
        %157 = sbr.rel (%p155) target = $region24
      $region23: #{tpu_custom_call.1} parent=5 // pred_region
        // Predicated region
        $region25: #{tpu_custom_call.1} parent=23 // pred_check
          %p158 = pneg %p33
        $region26: #{tpu_custom_call.1} parent=23 // pred_check_branch
          %160 = sbr.rel (%p158) target = $region28
        $region27: #{tpu_custom_call.1} parent=23 // pred_region
          %p161 = scmp.lt.s32.totalorder %s13, 1
          %s162 = scalar_select %p161, %s13, 1
          %s163 = smul.addr %s162, 8
          %s164 = smul.addr %s163, 4
          %s165 = scalar_lea.vmem %s0, %s164
        $region28: #{tpu_custom_call.1} parent=23 // pred_fallthru
          _
        // Predicated region
        $region29: #{tpu_custom_call.1} parent=23 // pred_check
          %p166 = pneg %p59
        $region30: #{tpu_custom_call.1} parent=23 // pred_check_branch
          %168 = sbr.rel (%p166) target = $region32
        $region31: #{tpu_custom_call.1} parent=23 // pred_region
          %p169 = scmp.lt.s32.totalorder %s13, 1
          %s170 = scalar_select %p169, %s13, 1
          %s171 = smul.addr %s170, 4
          %s172 = smul.addr %s171, 4
          %s173 = scalar_lea.vmem %s1, %s172
        $region32: #{tpu_custom_call.1} parent=23 // pred_fallthru
          _
      $region24: #{tpu_custom_call.1} parent=5 // pred_fallthru
        _
      %p174 = scmp.le.s32.totalorder 1, %s13
      %p175 = scmp.lt.s32.totalorder %s13, 3
      %p176 = pnand %p174, %p175
      %p177 = pneg %p176
      // Predicated region
      $region33: #{tpu_custom_call.1} parent=5 // pred_check
        _
      $region34: #{tpu_custom_call.1} parent=5 // pred_check_branch
        %179 = sbr.rel (%p176) target = $region36
      $region35: #{tpu_custom_call.1} parent=5 // pred_region
        %s180 = ssub.s32 %s13, 1
        %p181 = scmp.lt.s32.totalorder %s18, 1
        %s182 = scalar_select %p181, %s18, 1
        %s183 = smul.addr %s182, 8
        %s184 = smul.addr %s183, 4
        %s185 = scalar_lea.vmem %s0, %s184
        %p186 = pneg %p39
        %p187 = pneg %p36
        %p188 = scmp.lt.s32.totalorder %s18, 1
        %s189 = scalar_select %p188, %s18, 1
        %s190 = smul.addr %s189, 4
        %s191 = smul.addr %s190, 4
        %s192 = scalar_lea.vmem %s1, %s191
        %p193 = pneg %p65
        %p194 = pneg %p62
        %p195 = pneg %p86
        %p196 = pneg %p83
        %p197 = pneg %p107
        %p198 = pneg %p104
        %p199 = pneg %p133
        %p200 = pneg %p130
        %s201 = sand.u32 %s120, 1
        %s202 = scalar_lea.sflag [#allocation3], %s201
        %s203 = sand.u32 %s120, 1
        %s204 = smul.addr %s203, 64
        %s205 = scalar_lea.vmem [#allocation2], %s204
        %p206 = scmp.lt.s32.totalorder %s18, 1
        %s207 = scalar_select %p206, %s18, 1
        %s208 = smul.addr %s207, 8
        %s209 = smul.addr %s208, 4
        %s210 = scalar_lea.vmem %s0, %s209
        %p211 = scmp.lt.s32.totalorder %s18, 1
        %s212 = scalar_select %p211, %s18, 1
        %s213 = smul.addr %s212, 4
        %s214 = smul.addr %s213, 4
        %s215 = scalar_lea.vmem %s1, %s214
        %v217 = vld [vmem:[%s210] sm:$0xff]
        %v218 = vld [vmem:[%s210 + $0x8] sm:$0xff]
        %v219 = vld [vmem:[%s210 + $0x10] sm:$0xff]
        %v220 = vld [vmem:[%s210 + $0x18] sm:$0xff]
        %v221 = vld [vmem:[%s215] sm:$0xf]
        %v222 = vld [vmem:[%s215 + $0x4] sm:$0xf]
        %v223 = vld [vmem:[%s215 + $0x8] sm:$0xf]
        %v224 = vld [vmem:[%s215 + $0xc] sm:$0xf]
        %v225 = vld [vmem:[%s2] sm:$0xf]
        %v226 = vld [vmem:[%s2 + $0x4] sm:$0xf]
        %v227 = vld [vmem:[%s2 + $0x8] sm:$0xf]
        %v228 = vld [vmem:[%s2 + $0xc] sm:$0xf]
        %v229 = vld [vmem:[%s2 + $0x10] sm:$0xf]
        %v230 = vld [vmem:[%s2 + $0x14] sm:$0xf]
        %v231 = vld [vmem:[%s2 + $0x18] sm:$0xf]
        %v232 = vld [vmem:[%s2 + $0x1c] sm:$0xf]
        %v233 = vld [vmem:[%s2 + $0x20] sm:$0xf]
        %v234 = vld [vmem:[%s2 + $0x24] sm:$0xf]
        %v235 = vld [vmem:[%s2 + $0x28] sm:$0xf]
        %v236 = vld [vmem:[%s2 + $0x2c] sm:$0xf]
        %v237 = vld [vmem:[%s2 + $0x30] sm:$0xf]
        %v238 = vld [vmem:[%s2 + $0x34] sm:$0xf]
        %v239 = vld [vmem:[%s2 + $0x38] sm:$0xf]
        %v240 = vld [vmem:[%s2 + $0x3c] sm:$0xf]
        %v241 = vld [vmem:[%s2 + $0x40] sm:$0xf]
        %v242 = vld [vmem:[%s2 + $0x44] sm:$0xf]
        %v243 = vld [vmem:[%s3] sm:$0xff]
        %v244 = vld [vmem:[%s3 + $0x8] sm:$0xff]
        %v245 = vld [vmem:[%s3 + $0x10] sm:$0xff]
        %v246 = vld [vmem:[%s3 + $0x18] sm:$0xff]
        %v247 = vld [vmem:[%s3 + $0x20] sm:$0xff]
        %v248 = vld [vmem:[%s3 + $0x28] sm:$0xff]
        %v249 = vld [vmem:[%s3 + $0x30] sm:$0xff]
        %v250 = vld [vmem:[%s3 + $0x38] sm:$0xff]
        %v251 = vld [vmem:[%s3 + $0x40] sm:$0xff]
        %v252 = vld [vmem:[%s3 + $0x48] sm:$0xff]
        %v253 = vld [vmem:[%s3 + $0x50] sm:$0xff]
        %v254 = vld [vmem:[%s3 + $0x58] sm:$0xff]
        %v255 = vld [vmem:[%s3 + $0x60] sm:$0xff]
        %v256 = vld [vmem:[%s3 + $0x68] sm:$0xff]
        %v257 = vld [vmem:[%s3 + $0x70] sm:$0xff]
        %v258 = vld [vmem:[%s3 + $0x78] sm:$0xff]
        %v259 = vld [vmem:[%s3 + $0x80] sm:$0xff]
        %v260 = vld [vmem:[%s3 + $0x88] sm:$0xff]
        %262 = vset.pattern.permute.xlu0 0
        %263 = vperm.xlu0 %262, %v243
        %v264 = vpop.permute.xlu0 %263
        %267 = vset.pattern.permute.xlu0 0
        %268 = vperm.xlu0 %267, %v244
        %v269 = vpop.permute.xlu0 %268
        %v273 = vunpack.c.l.b16 %v237
        %v274 = vunpack.c.l.b16 %v238
        %v275 = vpack.c.b16 %v274, %v273
        %v280 = vunpack.c.l.b16 %v217
        %v281 = vunpack.c.h.b16 %v217
        %v282 = vunpack.c.l.b16 %v218
        %v283 = vunpack.c.h.b16 %v218
        %v284 = vunpack.c.l.b16 %v219
        %v285 = vunpack.c.h.b16 %v219
        %v286 = vunpack.c.l.b16 %v220
        %v287 = vunpack.c.h.b16 %v220
        %v288 = vpack.c.b16 %v282, %v280
        %v289 = vpack.c.b16 %v283, %v281
        %v290 = vpack.c.b16 %v286, %v284
        %v291 = vpack.c.b16 %v287, %v285
        %vm296 = vcmask 261120
        %v298 = vsel %vm296, %v275, 0
        %300 = vmatpush.bf16.msra.mxu0 0
        %301 = vmatpush.bf16.msra.mxu0 0
        %302 = vmatpush.bf16.msra.mxu0 0
        %303 = vmatpush.bf16.msra.mxu0 0
        %304 = vmatpush.bf16.msra.mxu0 0
        %305 = vmatpush.bf16.msra.mxu0 0
        %306 = vmatpush.bf16.msra.mxu0 %v290
        %307 = vmatpush.bf16.msra.mxu0 %v288
        %308 = vmatmul.bf16.gmra.mxu0 %v298
        %v309 = vpop.f32.mrf.mxu0
        %v310 = vadd.f32 %v264, %v309
        %v311 = vpop.f32.mrf.mxu0
        %v312 = vadd.f32 %v269, %v311
        %313 = vdwg.mxu0
        %314 = vmatpush.bf16.msra.mxu0 0
        %315 = vmatpush.bf16.msra.mxu0 0
        %316 = vmatpush.bf16.msra.mxu0 0
        %317 = vmatpush.bf16.msra.mxu0 0
        %318 = vmatpush.bf16.msra.mxu0 0
        %319 = vmatpush.bf16.msra.mxu0 0
        %320 = vmatpush.bf16.msra.mxu0 %v291
        %321 = vmatpush.bf16.msra.mxu0 %v289
        %322 = vmatmul.bf16.gmra.mxu0 %v298
        %v323 = vpop.f32.mrf.mxu0
        %v324 = vadd.f32 %v264, %v323
        %v325 = vpop.f32.mrf.mxu0
        %v326 = vadd.f32 %v269, %v325
        %327 = vdwg.mxu0
        %v328 = vmax.f32 %v310, 0.0
        %v329 = vmax.f32 %v324, 0.0
        %v330 = vmax.f32 %v312, 0.0
        %v331 = vmax.f32 %v326, 0.0
        %v332 = vpack.c.bf16 %v330, %v328
        %v333 = vpack.c.bf16 %v331, %v329
        %335 = vset.pattern.permute.xlu0 0
        %336 = vperm.xlu0 %335, %v245
        %v337 = vpop.permute.xlu0 %336
        %340 = vset.pattern.permute.xlu0 0
        %341 = vperm.xlu0 %340, %v246
        %v342 = vpop.permute.xlu0 %341
        %v346 = vunpack.c.l.b16 %v239
        %v347 = vunpack.c.l.b16 %v240
        %v348 = vpack.c.b16 %v347, %v346
        %vm349 = vcmask 130048
        %v351 = vsel %vm349, %v348, 0
        %353 = vmatpush.bf16.msra.mxu0 0
        %354 = vmatpush.bf16.msra.mxu0 0
        %355 = vmatpush.bf16.msra.mxu0 0
        %356 = vmatpush.bf16.msra.mxu0 0
        %357 = vmatpush.bf16.msra.mxu0 0
        %358 = vmatpush.bf16.msra.mxu0 0
        %359 = vmatpush.bf16.msra.mxu0 0
        %360 = vmatpush.bf16.msra.mxu0 %v332
        %361 = vmatmul.bf16.gmra.mxu0 %v351
        %v362 = vpop.f32.mrf.mxu0
        %v363 = vadd.f32 %v337, %v362
        %v364 = vpop.f32.mrf.mxu0
        %v365 = vadd.f32 %v342, %v364
        %366 = vdwg.mxu0
        %367 = vmatpush.bf16.msra.mxu0 0
        %368 = vmatpush.bf16.msra.mxu0 0
        %369 = vmatpush.bf16.msra.mxu0 0
        %370 = vmatpush.bf16.msra.mxu0 0
        %371 = vmatpush.bf16.msra.mxu0 0
        %372 = vmatpush.bf16.msra.mxu0 0
        %373 = vmatpush.bf16.msra.mxu0 0
        %374 = vmatpush.bf16.msra.mxu0 %v333
        %375 = vmatmul.bf16.gmra.mxu0 %v351
        %v376 = vpop.f32.mrf.mxu0
        %v377 = vadd.f32 %v337, %v376
        %v378 = vpop.f32.mrf.mxu0
        %v379 = vadd.f32 %v342, %v378
        %380 = vdwg.mxu0
        %v381 = vmax.f32 %v363, 0.0
        %v382 = vmax.f32 %v377, 0.0
        %v383 = vmax.f32 %v365, 0.0
        %v384 = vmax.f32 %v379, 0.0
        %386 = vset.pattern.permute.xlu0 0
        %387 = vperm.xlu0 %386, %v247
        %v388 = vpop.permute.xlu0 %387
        %391 = vset.pattern.permute.xlu0 0
        %392 = vperm.xlu0 %391, %v248
        %v393 = vpop.permute.xlu0 %392
        %396 = vset.pattern.permute.xlu0 0
        %397 = vperm.xlu0 %396, %v249
        %v398 = vpop.permute.xlu0 %397
        %401 = vset.pattern.permute.xlu0 0
        %402 = vperm.xlu0 %401, %v250
        %v403 = vpop.permute.xlu0 %402
        %v409 = vunpack.c.l.b16 %v229
        %v410 = vunpack.c.l.b16 %v230
        %v411 = vunpack.c.l.b16 %v231
        %v412 = vunpack.c.l.b16 %v232
        %v413 = vpack.c.b16 %v410, %v409
        %v414 = vpack.c.b16 %v412, %v411
        %v419 = vunpack.c.l.b16 %v221
        %v420 = vunpack.c.l.b16 %v222
        %v421 = vunpack.c.l.b16 %v223
        %v422 = vunpack.c.l.b16 %v224
        %v423 = vpack.c.b16 %v420, %v419
        %v424 = vpack.c.b16 %v422, %v421
        %v428 = vsel %vm296, %v413, 0
        %v431 = vsel %vm296, %v414, 0
        %433 = vmatpush.bf16.msra.mxu0 0
        %434 = vmatpush.bf16.msra.mxu0 0
        %435 = vmatpush.bf16.msra.mxu0 0
        %436 = vmatpush.bf16.msra.mxu0 0
        %437 = vmatpush.bf16.msra.mxu0 0
        %438 = vmatpush.bf16.msra.mxu0 0
        %439 = vmatpush.bf16.msra.mxu0 %v424
        %440 = vmatpush.bf16.msra.mxu0 %v423
        %441 = vmatmul.bf16.gmra.mxu0 %v428
        %v442 = vpop.f32.mrf.mxu0
        %v443 = vadd.f32 %v388, %v442
        %v444 = vpop.f32.mrf.mxu0
        %v445 = vadd.f32 %v393, %v444
        %446 = vmatmul.bf16.gmra.mxu0 %v431
        %v447 = vpop.f32.mrf.mxu0
        %v448 = vadd.f32 %v398, %v447
        %v449 = vpop.f32.mrf.mxu0
        %v450 = vadd.f32 %v403, %v449
        %451 = vdwg.mxu0
        %v452 = vmax.f32 %v443, 0.0
        %v453 = vmax.f32 %v445, 0.0
        %v454 = vmax.f32 %v448, 0.0
        %v455 = vmax.f32 %v450, 0.0
        %v456 = vpack.c.bf16 %v453, %v452
        %v457 = vpack.c.bf16 %v455, %v454
        %459 = vset.pattern.permute.xlu0 0
        %460 = vperm.xlu0 %459, %v251
        %v461 = vpop.permute.xlu0 %460
        %464 = vset.pattern.permute.xlu0 0
        %465 = vperm.xlu0 %464, %v252
        %v466 = vpop.permute.xlu0 %465
        %v470 = vunpack.c.l.b16 %v241
        %v471 = vunpack.c.l.b16 %v242
        %v472 = vpack.c.b16 %v471, %v470
        %v474 = vsel %vm349, %v472, 0
        %476 = vmatpush.bf16.msra.mxu0 0
        %477 = vmatpush.bf16.msra.mxu0 0
        %478 = vmatpush.bf16.msra.mxu0 0
        %479 = vmatpush.bf16.msra.mxu0 0
        %480 = vmatpush.bf16.msra.mxu0 0
        %481 = vmatpush.bf16.msra.mxu0 0
        %482 = vmatpush.bf16.msra.mxu0 0
        %483 = vmatpush.bf16.msra.mxu0 %v456
        %484 = vmatmul.bf16.gmra.mxu0 %v474
        %v485 = vpop.f32.mrf.mxu0
        %v486 = vadd.f32 %v461, %v485
        %v487 = vpop.f32.mrf.mxu0
        %v488 = vadd.f32 %v466, %v487
        %489 = vdwg.mxu0
        %v490 = vmax.f32 %v486, 0.0
        %v491 = vmax.f32 %v488, 0.0
        %492 = vxpose.xlu0.b32.start [1/16] %v490, 128
        %493 = vxpose.xlu0.b32.cont [2/16] %v491, 128
        %494 = vxpose.xlu0.b32.cont [3/16] 0.0, 128
        %495 = vxpose.xlu0.b32.cont [4/16] 0.0, 128
        %496 = vxpose.xlu0.b32.cont [5/16] 0.0, 128
        %497 = vxpose.xlu0.b32.cont [6/16] 0.0, 128
        %498 = vxpose.xlu0.b32.cont [7/16] 0.0, 128
        %499 = vxpose.xlu0.b32.cont [8/16] 0.0, 128
        %500 = vxpose.xlu0.b32.cont [9/16] 0.0, 128
        %501 = vxpose.xlu0.b32.cont [10/16] 0.0, 128
        %502 = vxpose.xlu0.b32.cont [11/16] 0.0, 128
        %503 = vxpose.xlu0.b32.cont [12/16] 0.0, 128
        %504 = vxpose.xlu0.b32.cont [13/16] 0.0, 128
        %505 = vxpose.xlu0.b32.cont [14/16] 0.0, 128
        %506 = vxpose.xlu0.b32.cont [15/16] 0.0, 128
        %507 = vxpose.xlu0.b32.end [16/16] 0.0, 128
        %v508 = vpop.trf.xlu0
        %v509 = vpop.trf.xlu0
        %v510 = vpop.trf.xlu0
        %v511 = vpop.trf.xlu0
        %v512 = vpop.trf.xlu0
        %v513 = vpop.trf.xlu0
        %v514 = vpop.trf.xlu0
        %v515 = vpop.trf.xlu0
        %v516 = vpop.trf.xlu0
        %v517 = vpop.trf.xlu0
        %v518 = vpop.trf.xlu0
        %v519 = vpop.trf.xlu0
        %v520 = vpop.trf.xlu0
        %v521 = vpop.trf.xlu0
        %v522 = vpop.trf.xlu0
        %v523 = vpop.trf.xlu0
        %v524 = vpack.c.bf16 %v508, %v508
        %v525 = vpack.c.bf16 %v383, %v381
        %v526 = vpack.c.bf16 %v384, %v382
        %v528 = vsel %vm349, %v524, 0
        %530 = vmatpush.bf16.msra.mxu0 0
        %531 = vmatpush.bf16.msra.mxu0 0
        %532 = vmatpush.bf16.msra.mxu0 0
        %533 = vmatpush.bf16.msra.mxu0 0
        %534 = vmatpush.bf16.msra.mxu0 0
        %535 = vmatpush.bf16.msra.mxu0 0
        %536 = vmatpush.bf16.msra.mxu0 0
        %537 = vmatpush.bf16.msra.mxu0 %v525
        %538 = vmatmul.bf16.gmra.mxu0 %v528
        %v539 = vpop.f32.mrf.mxu0
        %v540 = vadd.f32 0.0, %v539
        %v541 = vpop.f32.mrf.mxu0
        %542 = vdwg.mxu0
        %543 = vmatpush.bf16.msra.mxu0 0
        %544 = vmatpush.bf16.msra.mxu0 0
        %545 = vmatpush.bf16.msra.mxu0 0
        %546 = vmatpush.bf16.msra.mxu0 0
        %547 = vmatpush.bf16.msra.mxu0 0
        %548 = vmatpush.bf16.msra.mxu0 0
        %549 = vmatpush.bf16.msra.mxu0 0
        %550 = vmatpush.bf16.msra.mxu0 %v526
        %551 = vmatmul.bf16.gmra.mxu0 %v528
        %v552 = vpop.f32.mrf.mxu0
        %v553 = vadd.f32 0.0, %v552
        %v554 = vpop.f32.mrf.mxu0
        %555 = vdwg.mxu0
        %v556 = vrot.slane %v540, 4
        %v557 = vmax.f32 %v540, %v556
        %v558 = vrot.slane %v557, 2
        %v559 = vmax.f32 %v557, %v558
        %v560 = vrot.slane %v559, 1
        %v561 = vmax.f32 %v559, %v560
        %v562 = vrot.slane %v553, 4
        %v563 = vmax.f32 %v553, %v562
        %v564 = vrot.slane %v563, 2
        %v565 = vmax.f32 %v563, %v564
        %v566 = vrot.slane %v565, 1
        %v567 = vmax.f32 %v565, %v566
        %v568 = vsub.f32 %v540, %v561
        %v569 = vsub.f32 %v553, %v567
        %v570 = vmul.f32 %v568, 1.442695
        %v571 = vpow.pop %v570
        %v572 = vmul.f32 %v569, 1.442695
        %v573 = vpow.pop %v572
        %v574 = vrot.slane %v571, 4
        %v575 = vadd.f32 %v571, %v574
        %v576 = vrot.slane %v575, 2
        %v577 = vadd.f32 %v575, %v576
        %v578 = vrot.slane %v577, 1
        %v579 = vadd.f32 %v577, %v578
        %v580 = vrot.slane %v573, 4
        %v581 = vadd.f32 %v573, %v580
        %v582 = vrot.slane %v581, 2
        %v583 = vadd.f32 %v581, %v582
        %v584 = vrot.slane %v583, 1
        %v585 = vadd.f32 %v583, %v584
        %v586 = vrcp.pop %v579
        %v587 = vrcp.pop %v585
        %v588 = vmul.f32 %v571, %v586
        %v589 = vmul.f32 %v573, %v587
        %v590 = vpack.c.bf16 %v588, %v588
        %v591 = vpack.c.bf16 %v589, %v589
        %vm592 = vcmask 64512
        %v594 = vsel %vm592, %v457, 0
        %vm596 = vcmask 1043456
        %v598 = vsel %vm596, %v590, 0
        %v601 = vsel %vm596, %v591, 0
        %603 = vmatpush.bf16.msra.mxu0 0
        %604 = vmatpush.bf16.msra.mxu0 0
        %605 = vmatpush.bf16.msra.mxu0 0
        %606 = vmatpush.bf16.msra.mxu0 0
        %607 = vmatpush.bf16.msra.mxu0 0
        %608 = vmatpush.bf16.msra.mxu0 0
        %609 = vmatpush.bf16.msra.mxu0 0
        %610 = vmatpush.bf16.msra.mxu0 %v598
        %611 = vmatmul.bf16.gmra.mxu0 %v594
        %v612 = vpop.f32.mrf.mxu0
        %v613 = vadd.f32 0.0, %v612
        %v614 = vpop.f32.mrf.mxu0
        %v615 = vadd.f32 0.0, %v614
        %616 = vdwg.mxu0
        %617 = vmatpush.bf16.msra.mxu0 0
        %618 = vmatpush.bf16.msra.mxu0 0
        %619 = vmatpush.bf16.msra.mxu0 0
        %620 = vmatpush.bf16.msra.mxu0 0
        %621 = vmatpush.bf16.msra.mxu0 0
        %622 = vmatpush.bf16.msra.mxu0 0
        %623 = vmatpush.bf16.msra.mxu0 0
        %624 = vmatpush.bf16.msra.mxu0 %v601
        %625 = vmatmul.bf16.gmra.mxu0 %v594
        %v626 = vpop.f32.mrf.mxu0
        %v627 = vadd.f32 0.0, %v626
        %v628 = vpop.f32.mrf.mxu0
        %v629 = vadd.f32 0.0, %v628
        %630 = vdwg.mxu0
        %v631 = vpack.c.bf16 %v615, %v613
        %v632 = vpack.c.bf16 %v629, %v627
        %634 = vset.pattern.permute.xlu0 0
        %635 = vperm.xlu0 %634, %v253
        %v636 = vpop.permute.xlu0 %635
        %639 = vset.pattern.permute.xlu0 0
        %640 = vperm.xlu0 %639, %v254
        %v641 = vpop.permute.xlu0 %640
        %644 = vset.pattern.permute.xlu0 0
        %645 = vperm.xlu0 %644, %v255
        %v646 = vpop.permute.xlu0 %645
        %649 = vset.pattern.permute.xlu0 0
        %650 = vperm.xlu0 %649, %v256
        %v651 = vpop.permute.xlu0 %650
        %v657 = vunpack.c.l.b16 %v233
        %v658 = vunpack.c.l.b16 %v234
        %v659 = vunpack.c.l.b16 %v235
        %v660 = vunpack.c.l.b16 %v236
        %v661 = vpack.c.b16 %v658, %v657
        %v662 = vpack.c.b16 %v660, %v659
        %v664 = vsel %vm349, %v661, 0
        %v667 = vsel %vm349, %v662, 0
        %669 = vmatpush.bf16.msra.mxu0 0
        %670 = vmatpush.bf16.msra.mxu0 0
        %671 = vmatpush.bf16.msra.mxu0 0
        %672 = vmatpush.bf16.msra.mxu0 0
        %673 = vmatpush.bf16.msra.mxu0 0
        %674 = vmatpush.bf16.msra.mxu0 0
        %675 = vmatpush.bf16.msra.mxu0 0
        %676 = vmatpush.bf16.msra.mxu0 %v631
        %677 = vmatmul.bf16.gmra.mxu0 %v664
        %v678 = vpop.f32.mrf.mxu0
        %v679 = vadd.f32 %v636, %v678
        %v680 = vpop.f32.mrf.mxu0
        %v681 = vadd.f32 %v641, %v680
        %682 = vmatmul.bf16.gmra.mxu0 %v667
        %v683 = vpop.f32.mrf.mxu0
        %v684 = vadd.f32 %v646, %v683
        %v685 = vpop.f32.mrf.mxu0
        %v686 = vadd.f32 %v651, %v685
        %687 = vdwg.mxu0
        %688 = vmatpush.bf16.msra.mxu0 0
        %689 = vmatpush.bf16.msra.mxu0 0
        %690 = vmatpush.bf16.msra.mxu0 0
        %691 = vmatpush.bf16.msra.mxu0 0
        %692 = vmatpush.bf16.msra.mxu0 0
        %693 = vmatpush.bf16.msra.mxu0 0
        %694 = vmatpush.bf16.msra.mxu0 0
        %695 = vmatpush.bf16.msra.mxu0 %v632
        %696 = vmatmul.bf16.gmra.mxu0 %v664
        %v697 = vpop.f32.mrf.mxu0
        %v698 = vadd.f32 %v636, %v697
        %v699 = vpop.f32.mrf.mxu0
        %v700 = vadd.f32 %v641, %v699
        %701 = vmatmul.bf16.gmra.mxu0 %v667
        %v702 = vpop.f32.mrf.mxu0
        %v703 = vadd.f32 %v646, %v702
        %v704 = vpop.f32.mrf.mxu0
        %v705 = vadd.f32 %v651, %v704
        %706 = vdwg.mxu0
        %v707 = vmax.f32 %v679, 0.0
        %v708 = vmax.f32 %v698, 0.0
        %v709 = vmax.f32 %v681, 0.0
        %v710 = vmax.f32 %v700, 0.0
        %v711 = vmax.f32 %v684, 0.0
        %v712 = vmax.f32 %v703, 0.0
        %v713 = vmax.f32 %v686, 0.0
        %v714 = vmax.f32 %v705, 0.0
        %v715 = vpack.c.bf16 %v708, %v707
        %v716 = vpack.c.bf16 %v710, %v709
        %v717 = vpack.c.bf16 %v712, %v711
        %v718 = vpack.c.bf16 %v714, %v713
        %v723 = vunpack.c.l.b16 %v715
        %v724 = vunpack.c.h.b16 %v715
        %v725 = vunpack.c.l.b16 %v716
        %v726 = vunpack.c.h.b16 %v716
        %v727 = vunpack.c.l.b16 %v717
        %v728 = vunpack.c.h.b16 %v717
        %v729 = vunpack.c.l.b16 %v718
        %v730 = vunpack.c.h.b16 %v718
        %v731 = vpack.c.b16 %v725, %v723
        %v732 = vpack.c.b16 %v726, %v724
        %v733 = vpack.c.b16 %v729, %v727
        %v734 = vpack.c.b16 %v730, %v728
        %740 = vset.pattern.permute.xlu0 0
        %741 = vperm.xlu0 %740, %v257
        %v742 = vpop.permute.xlu0 %741
        %745 = vset.pattern.permute.xlu0 0
        %746 = vperm.xlu0 %745, %v258
        %v747 = vpop.permute.xlu0 %746
        %750 = vset.pattern.permute.xlu0 0
        %751 = vperm.xlu0 %750, %v259
        %v752 = vpop.permute.xlu0 %751
        %755 = vset.pattern.permute.xlu0 0
        %756 = vperm.xlu0 %755, %v260
        %v757 = vpop.permute.xlu0 %756
        %v763 = vunpack.c.l.b16 %v225
        %v764 = vunpack.c.l.b16 %v226
        %v765 = vunpack.c.l.b16 %v227
        %v766 = vunpack.c.l.b16 %v228
        %v767 = vpack.c.b16 %v764, %v763
        %v768 = vpack.c.b16 %v766, %v765
        %vm769 = vcmask 523264
        %v771 = vsel %vm769, %v767, 0
        %v774 = vsel %vm769, %v768, 0
        %776 = vmatpush.bf16.msra.mxu0 0
        %777 = vmatpush.bf16.msra.mxu0 0
        %778 = vmatpush.bf16.msra.mxu0 0
        %779 = vmatpush.bf16.msra.mxu0 0
        %780 = vmatpush.bf16.msra.mxu0 %v290
        %781 = vmatpush.bf16.msra.mxu0 %v288
        %782 = vmatpush.bf16.msra.mxu0 %v733
        %783 = vmatpush.bf16.msra.mxu0 %v731
        %784 = vmatmul.bf16.gmra.mxu0 %v771
        %v785 = vpop.f32.mrf.mxu0
        %v786 = vadd.f32 %v742, %v785
        %v787 = vpop.f32.mrf.mxu0
        %v788 = vadd.f32 %v747, %v787
        %789 = vmatmul.bf16.gmra.mxu0 %v774
        %v790 = vpop.f32.mrf.mxu0
        %v791 = vadd.f32 %v752, %v790
        %v792 = vpop.f32.mrf.mxu0
        %v793 = vadd.f32 %v757, %v792
        %794 = vdwg.mxu0
        %795 = vmatpush.bf16.msra.mxu0 0
        %796 = vmatpush.bf16.msra.mxu0 0
        %797 = vmatpush.bf16.msra.mxu0 0
        %798 = vmatpush.bf16.msra.mxu0 0
        %799 = vmatpush.bf16.msra.mxu0 %v291
        %800 = vmatpush.bf16.msra.mxu0 %v289
        %801 = vmatpush.bf16.msra.mxu0 %v734
        %802 = vmatpush.bf16.msra.mxu0 %v732
        %803 = vmatmul.bf16.gmra.mxu0 %v771
        %v804 = vpop.f32.mrf.mxu0
        %v805 = vadd.f32 %v742, %v804
        %v806 = vpop.f32.mrf.mxu0
        %v807 = vadd.f32 %v747, %v806
        %808 = vmatmul.bf16.gmra.mxu0 %v774
        %v809 = vpop.f32.mrf.mxu0
        %v810 = vadd.f32 %v752, %v809
        %v811 = vpop.f32.mrf.mxu0
        %v812 = vadd.f32 %v757, %v811
        %813 = vdwg.mxu0
        %v814 = vmax.f32 %v786, 0.0
        %v815 = vmax.f32 %v805, 0.0
        %v816 = vmax.f32 %v788, 0.0
        %v817 = vmax.f32 %v807, 0.0
        %v818 = vmax.f32 %v791, 0.0
        %v819 = vmax.f32 %v810, 0.0
        %v820 = vmax.f32 %v793, 0.0
        %v821 = vmax.f32 %v812, 0.0
        %822 = vst [vmem:[%s205] sm:$0xff] %v814
        %823 = vst [vmem:[%s205 + $0x8] sm:$0xff] %v815
        %824 = vst [vmem:[%s205 + $0x10] sm:$0xff] %v816
        %825 = vst [vmem:[%s205 + $0x18] sm:$0xff] %v817
        %826 = vst [vmem:[%s205 + $0x20] sm:$0xff] %v818
        %827 = vst [vmem:[%s205 + $0x28] sm:$0xff] %v819
        %828 = vst [vmem:[%s205 + $0x30] sm:$0xff] %v820
        %829 = vst [vmem:[%s205 + $0x38] sm:$0xff] %v821
        %s830 = sand.u32 %s120, 1
        %s831 = scalar_lea.sflag [#allocation3], %s830
        %s832 = sand.u32 %s120, 1
        %s833 = smul.addr %s832, 64
        %s834 = scalar_lea.vmem [#allocation2], %s833
        // Predicated region
        $region37: #{tpu_custom_call.1} parent=35 // pred_check
          %p835 = pneg %p130
        $region38: #{tpu_custom_call.1} parent=35 // pred_check_branch
          %837 = sbr.rel (%p835) target = $region40
        $region39: #{tpu_custom_call.1} parent=35 // pred_region
          %839 = vsyncadd %s831, 0
          %s840 = smul.addr %s18, 8
          %s841 = smul.addr %s840, 8
          %s842 = scalar_lea.hbm %s4, %s841
          %s843 = sshll.u32 %s834, 4
          %s844 = int_to_ptr.vmem [resolvable:$true] %s843
          %s845 = sshll.u32 %s842, 4
          %s846 = int_to_ptr.hbm [resolvable:$true] %s845
          %851 = dma.vmem_to_hbm [thread:$0]  %s844, 1024, %s846, %s831, 256, 256, 16
        $region40: #{tpu_custom_call.1} parent=35 // pred_fallthru
          _
      $region36: #{tpu_custom_call.1} parent=5 // pred_fallthru
        _
      %p852 = scmp.le.s32.totalorder 2, %s13
      // Predicated region
      $region41: #{tpu_custom_call.1} parent=5 // pred_check
        %p853 = pneg %p852
      $region42: #{tpu_custom_call.1} parent=5 // pred_check_branch
        %855 = sbr.rel (%p853) target = $region44
      $region43: #{tpu_custom_call.1} parent=5 // pred_region
        %s856 = ssub.s32 %s13, 2
        // Predicated region
        $region45: #{tpu_custom_call.1} parent=43 // pred_check
          %p857 = pneg %p136
        $region46: #{tpu_custom_call.1} parent=43 // pred_check_branch
          %859 = sbr.rel (%p857) target = $region48
        $region47: #{tpu_custom_call.1} parent=43 // pred_region
          %s860 = sand.u32 %s121, 1
          %s861 = scalar_lea.sflag [#allocation3], %s860
          %s862 = sand.u32 %s121, 1
          %s863 = smul.addr %s862, 64
          %s864 = scalar_lea.vmem [#allocation2], %s863
          %866 = dma.done %s861, 1024
        $region48: #{tpu_custom_call.1} parent=43 // pred_fallthru
          _
      $region44: #{tpu_custom_call.1} parent=5 // pred_fallthru
        _
    $region6: #{tpu_custom_call.1} parent=1 // loop_footer
      %s17 = sadd.s32 1, %s13
    $region7: #{tpu_custom_call.1} parent=1 // loop_footer_branch
      %12 = sbr.rel target = $region3
    $region8: #{tpu_custom_call.1} parent=1 // loop_exit
      _
    %867 = vsyncpa [#allocation3], 1
    %s868 = scalar_lea.sflag [#allocation3], 1
    %869 = vsyncpa %s868, 1

</llo_original>
